<compile_context>
chip_gen: v5e
topology: v5e:2x2
jax: 0.10.0
libtpu: 0.0.40
codegen_flags: <defaults>
</compile_context>

<pallas_src>
import jax
import jax.numpy as jnp
from jax.experimental import pallas as pl
from jax.experimental.pallas import tpu as pltpu


def _choose_tiles(B, C, L, itemsize):
    """Pick (batch_tile, lane_tile) so ~4 live (bt, C, tl) buffers fit ~8 MiB."""
    budget = 8 << 20  # half of v5e's 16 MiB default scoped VMEM; ample on v6e/v7x

    def cost(bt, tl):  # x-in + out blocks, double-buffered
        return 4 * bt * C * tl * itemsize

    tl = L
    if cost(1, L) > budget:
        best = None
        cand = 128
        while cand < L and cost(1, cand) <= budget:
            if L % cand == 0:
                best = cand
            cand += 128
        if best is not None:
            tl = best
        # TODO(synk): if L has no 128-multiple divisor, the ragged last tile would need
        # zero/-inf lane masking in the reduce pass; tiles chosen here always divide L.

    bt = min(B, 8)
    while bt > 1 and (B % bt != 0 or cost(bt, tl) > budget):
        bt -= 1
    return max(bt, 1), tl


def channel_attention_mpl(x, w1, w2):
    """x: (B, C, L); w1: (32, C) = fc1 Conv1d weight; w2: (C, 32) = fc2 Conv1d weight.

    Returns (out = x + attn * x with shape (B, C, L),
             attn = sigmoid(mlp(avg_pool) + mlp(max_pool)) with shape (B, C, 1)),
    matching the PyTorch module's forward.
    """
    B, C, L = x.shape
    H = w1.shape[0]
    itemsize = jnp.dtype(x.dtype).itemsize

    bt, tl = _choose_tiles(B, C, L, itemsize)
    assert B % bt == 0 and L % tl == 0
    nb, nl = B // bt, L // tl

    # Pre-transpose weights once in the wrapper so in-kernel matmuls are lane-dense.
    w1t = w1.T.astype(jnp.float32)  # (C, H)
    w2t = w2.T.astype(jnp.float32)  # (H, C)
    inv_l = 1.0 / float(L)

    # ---------- Pass 1: pooled stats over L + fused MLP -> attention ----------
    def reduce_mlp_kernel(x_ref, w1t_ref, w2t_ref, attn_ref, sum_acc, max_acc):
        li = pl.program_id(1)

        @pl.when(li == 0)
        def _init():
            sum_acc[...] = jnp.zeros_like(sum_acc)
            max_acc[...] = jnp.full(max_acc.shape, -jnp.inf, max_acc.dtype)

        xt = x_ref[...].astype(jnp.float32)                          # (bt, C, tl)
        sum_acc[...] += jnp.sum(xt, axis=-1)                         # (bt, C)
        max_acc[...] = jnp.maximum(max_acc[...], jnp.max(xt, axis=-1))

        @pl.when(li == nl - 1)
        def _finalize():
            # Stack avg/max so both MLP branches share one matmul pair.
            stats = jnp.concatenate([sum_acc[...] * inv_l, max_acc[...]], axis=0)
            h = jnp.maximum(
                jnp.dot(stats, w1t_ref[...], preferred_element_type=jnp.float32), 0.0)
            o = jnp.dot(h, w2t_ref[...], preferred_element_type=jnp.float32)  # (2bt, C)
            attn = jax.nn.sigmoid(o[:bt] + o[bt:])                   # (bt, C) lane-dense
            attn_ref[...] = attn[:, None, :].astype(attn_ref.dtype)

    attn_b1c = pl.pallas_call(
        reduce_mlp_kernel,
        out_shape=jax.ShapeDtypeStruct((B, 1, C), jnp.float32),
        grid=(nb, nl),
        in_specs=[
            pl.BlockSpec((bt, C, tl), lambda b, l: (b, 0, l)),
            pl.BlockSpec((C, H), lambda b, l: (0, 0)),
            pl.BlockSpec((H, C), lambda b, l: (0, 0)),
        ],
        out_specs=pl.BlockSpec((bt, 1, C), lambda b, l: (b, 0, 0)),
        scratch_shapes=[
            pltpu.VMEM((bt, C), jnp.float32),   # running sum
            pltpu.VMEM((bt, C), jnp.float32),   # running max
        ],
        compiler_params=pltpu.CompilerParams(
            dimension_semantics=("parallel", "arbitrary")),
        cost_estimate=pl.CostEstimate(
            flops=2 * B * C * L + 8 * B * C * H,
            transcendentals=B * C,
            bytes_accessed=B * C * L * itemsize + B * C * 4),
    )(x, w1t, w2t)

    # ---------- Pass 2: out = x + attn * x, streamed at HBM roofline ----------
    attn_bc1 = attn_b1c.reshape(B, C, 1)   # same linear order -> layout-only reshape

    def apply_kernel(x_ref, a_ref, out_ref):
        xt = x_ref[...]
        out_ref[...] = (xt + a_ref[...] * xt).astype(out_ref.dtype)

    out = pl.pallas_call(
        apply_kernel,
        out_shape=jax.ShapeDtypeStruct((B, C, L), x.dtype),
        grid=(nb, nl),
        in_specs=[
            pl.BlockSpec((bt, C, tl), lambda b, l: (b, 0, l)),
            pl.BlockSpec((bt, C, 1), lambda b, l: (b, 0, 0)),
        ],
        out_specs=pl.BlockSpec((bt, C, tl), lambda b, l: (b, 0, l)),
        compiler_params=pltpu.CompilerParams(
            dimension_semantics=("parallel", "parallel")),
        cost_estimate=pl.CostEstimate(
            flops=2 * B * C * L,
            transcendentals=0,
            bytes_accessed=2 * B * C * L * itemsize + B * C * 4),
    )(x, attn_bc1)

    return out, attn_bc1.astype(x.dtype)


def _reference(x, w1, w2):
    avg = jnp.mean(x, axis=-1, keepdims=True)            # (B, C, 1)
    mx = jnp.max(x, axis=-1, keepdims=True)              # (B, C, 1)

    def mlp(v):  # v: (B, C, 1)
        h = jnp.einsum("hc,bcl->bhl", w1, v)             # (B, 32, 1)
        h = jnp.maximum(h, 0.0)
        return jnp.einsum("ch,bhl->bcl", w2, h)          # (B, C, 1)

    attn = jax.nn.sigmoid(mlp(avg) + mlp(mx))
    return x + attn * x, attn


if __name__ == "__main__":
    B, C, L, H = 2, 4, 16, 32
    key = jax.random.PRNGKey(0)
    kx, k1, k2 = jax.random.split(key, 3)

    x = jax.random.normal(kx, (B, C, L), dtype=jnp.float32)
    # Conv1d(C,32,1) weight -> (32, C); Conv1d(32,C,1) weight -> (C, 32).
    w1 = jax.random.normal(k1, (H, C), dtype=jnp.float32) * (1.0 / jnp.sqrt(C))
    w2 = jax.random.normal(k2, (C, H), dtype=jnp.float32) * (1.0 / jnp.sqrt(H))

    out, attn = channel_attention_mpl(x, w1, w2)
    out = jax.block_until_ready(out)
    attn = jax.block_until_ready(attn)

    ref_out, ref_attn = _reference(x, w1, w2)
    assert out.shape == (B, C, L) and attn.shape == (B, C, 1)
    assert jnp.allclose(out, ref_out, atol=1e-5, rtol=1e-5), "out mismatch"
    assert jnp.allclose(attn, ref_attn, atol=1e-5, rtol=1e-5), "attn mismatch"

    print("KERNEL_OK")
</pallas_src>

<mosaic_0001>
module attributes {stable_mosaic.version = 11 : i64} {
  func.func @reduce_mlp_kernel(%arg0: i32, %arg1: i32, %arg2: memref<2x4x16xf32, #tpu.memory_space<vmem>>, %arg3: memref<4x32xf32, #tpu.memory_space<vmem>>, %arg4: memref<32x4xf32, #tpu.memory_space<vmem>>, %arg5: memref<2x1x4xf32, #tpu.memory_space<vmem>>, %arg6: memref<2x4xf32, #tpu.memory_space<vmem>>, %arg7: memref<2x4xf32, #tpu.memory_space<vmem>>) attributes {dimension_semantics = [#tpu.dimension_semantics<parallel>, #tpu.dimension_semantics<arbitrary>], iteration_bounds = array<i64: 1, 1>, scalar_prefetch = 0 : i64, scratch_operands = 2 : i64, tpu.core_type = #tpu.core_type<tc>, window_params = [{transform_indices = @transform_0, window_bounds = array<i64: 2, 4, 16>}, {pipeline_mode = #tpu.pipeline_mode<synchronous>, transform_indices = @transform_1, window_bounds = array<i64: 4, 32>}, {pipeline_mode = #tpu.pipeline_mode<synchronous>, transform_indices = @transform_2, window_bounds = array<i64: 32, 4>}, {transform_indices = @transform_3, window_bounds = array<i64: 2, 1, 4>}]} {
    %c0_i32 = arith.constant 0 : i32
    %0 = arith.cmpi eq, %arg1, %c0_i32 : i32
    %1 = arith.extui %0 : i1 to i32
    %c0_i32_0 = arith.constant 0 : i32
    %2 = arith.cmpi ne, %1, %c0_i32_0 : i32
    scf.if %2 {
      %cst_14 = arith.constant 0.000000e+00 : f32
      %15 = vector.broadcast %cst_14 : f32 to vector<2x4xf32>
      %c0_15 = arith.constant 0 : index
      %c0_16 = arith.constant 0 : index
      %16 = vector.load %arg6[%c0_15, %c0_16] : memref<2x4xf32, #tpu.memory_space<vmem>>, vector<2x4xf32>
      tpu.vector_store %arg6[%c0_15, %c0_16], %15 {strides = array<i32>} : memref<2x4xf32, #tpu.memory_space<vmem>>, vector<2x4xf32>,
      %cst_17 = arith.constant 0xFF800000 : f32
      %17 = vector.broadcast %cst_17 : f32 to vector<2x4xf32>
      %c0_18 = arith.constant 0 : index
      %c0_19 = arith.constant 0 : index
      %18 = vector.load %arg7[%c0_18, %c0_19] : memref<2x4xf32, #tpu.memory_space<vmem>>, vector<2x4xf32>
      tpu.vector_store %arg7[%c0_18, %c0_19], %17 {strides = array<i32>} : memref<2x4xf32, #tpu.memory_space<vmem>>, vector<2x4xf32>,
    } else {
    }
    %c0 = arith.constant 0 : index
    %c0_1 = arith.constant 0 : index
    %c0_2 = arith.constant 0 : index
    %3 = vector.load %arg2[%c0, %c0_1, %c0_2] : memref<2x4x16xf32, #tpu.memory_space<vmem>>, vector<2x4x16xf32>
    %c0_3 = arith.constant 0 : index
    %c0_4 = arith.constant 0 : index
    %4 = vector.load %arg6[%c0_3, %c0_4] : memref<2x4xf32, #tpu.memory_space<vmem>>, vector<2x4xf32>
    %cst = arith.constant dense<0.000000e+00> : vector<2x4xf32>
    %5 = vector.multi_reduction <add>, %3, %cst [2] : vector<2x4x16xf32> to vector<2x4xf32>
    %6 = arith.addf %4, %5 : vector<2x4xf32>
    %c0_5 = arith.constant 0 : index
    %c0_6 = arith.constant 0 : index
    %7 = vector.load %arg6[%c0_5, %c0_6] : memref<2x4xf32, #tpu.memory_space<vmem>>, vector<2x4xf32>
    tpu.vector_store %arg6[%c0_5, %c0_6], %6 {strides = array<i32>} : memref<2x4xf32, #tpu.memory_space<vmem>>, vector<2x4xf32>,
    %c0_7 = arith.constant 0 : index
    %c0_8 = arith.constant 0 : index
    %8 = vector.load %arg7[%c0_7, %c0_8] : memref<2x4xf32, #tpu.memory_space<vmem>>, vector<2x4xf32>
    %cst_9 = arith.constant dense<0xFF800000> : vector<2x4xf32>
    %9 = vector.multi_reduction <maximumf>, %3, %cst_9 [2] : vector<2x4x16xf32> to vector<2x4xf32>
    %10 = arith.maximumf %8, %9 : vector<2x4xf32>
    %c0_10 = arith.constant 0 : index
    %c0_11 = arith.constant 0 : index
    %11 = vector.load %arg7[%c0_10, %c0_11] : memref<2x4xf32, #tpu.memory_space<vmem>>, vector<2x4xf32>
    tpu.vector_store %arg7[%c0_10, %c0_11], %10 {strides = array<i32>} : memref<2x4xf32, #tpu.memory_space<vmem>>, vector<2x4xf32>,
    %c0_i32_12 = arith.constant 0 : i32
    %12 = arith.cmpi eq, %arg1, %c0_i32_12 : i32
    %13 = arith.extui %12 : i1 to i32
    %c0_i32_13 = arith.constant 0 : i32
    %14 = arith.cmpi ne, %13, %c0_i32_13 : i32
    scf.if %14 {
      %c0_14 = arith.constant 0 : index
      %c0_15 = arith.constant 0 : index
      %15 = vector.load %arg6[%c0_14, %c0_15] : memref<2x4xf32, #tpu.memory_space<vmem>>, vector<2x4xf32>
      %cst_16 = arith.constant 6.250000e-02 : f32
      %16 = vector.broadcast %cst_16 : f32 to vector<2x4xf32>
      %17 = arith.mulf %15, %16 : vector<2x4xf32>
      %c0_17 = arith.constant 0 : index
      %c0_18 = arith.constant 0 : index
      %18 = vector.load %arg7[%c0_17, %c0_18] : memref<2x4xf32, #tpu.memory_space<vmem>>, vector<2x4xf32>
      %19 = tpu.concatenate %17, %18 in 0 : vector<2x4xf32>, vector<2x4xf32> -> vector<4x4xf32>
      %c0_19 = arith.constant 0 : index
      %c0_20 = arith.constant 0 : index
      %20 = vector.load %arg3[%c0_19, %c0_20] : memref<4x32xf32, #tpu.memory_space<vmem>>, vector<4x32xf32>
      %cst_21 = arith.constant dense<0.000000e+00> : vector<4x32xf32>
      %21 = tpu.matmul %19, %20, %cst_21 {dimension_numbers = #tpu.dot_dimension_numbers<[1], [0], [0], [1], [0, 0, 1, 1], [], []>} : vector<4x4xf32>, vector<4x32xf32>, vector<4x32xf32> -> vector<4x32xf32>
      %cst_22 = arith.constant 0.000000e+00 : f32
      %22 = vector.broadcast %cst_22 : f32 to vector<4x32xf32>
      %23 = arith.maximumf %21, %22 : vector<4x32xf32>
      %c0_23 = arith.constant 0 : index
      %c0_24 = arith.constant 0 : index
      %24 = vector.load %arg4[%c0_23, %c0_24] : memref<32x4xf32, #tpu.memory_space<vmem>>, vector<32x4xf32>
      %cst_25 = arith.constant dense<0.000000e+00> : vector<4x4xf32>
      %25 = tpu.matmul %23, %24, %cst_25 {dimension_numbers = #tpu.dot_dimension_numbers<[1], [0], [0], [1], [0, 0, 1, 1], [], []>} : vector<4x32xf32>, vector<32x4xf32>, vector<4x4xf32> -> vector<4x4xf32>
      %26 = vector.extract_strided_slice %25 {offsets = [0, 0], sizes = [2, 4], strides = [1, 1]} : vector<4x4xf32> to vector<2x4xf32>
      %27 = vector.extract_strided_slice %25 {offsets = [2, 0], sizes = [2, 4], strides = [1, 1]} : vector<4x4xf32> to vector<2x4xf32>
      %28 = arith.addf %26, %27 : vector<2x4xf32>
      %29 = arith.negf %28 : vector<2x4xf32>
      %30 = math.exp %29 : vector<2x4xf32>
      %cst_26 = arith.constant 1.000000e+00 : f32
      %31 = vector.broadcast %cst_26 : f32 to vector<2x4xf32>
      %32 = arith.addf %31, %30 : vector<2x4xf32>
      %33 = arith.divf %31, %32 : vector<2x4xf32>
      %34 = vector.shape_cast %33 : vector<2x4xf32> to vector<2x1x4xf32>
      %c0_27 = arith.constant 0 : index
      %c0_28 = arith.constant 0 : index
      %c0_29 = arith.constant 0 : index
      %35 = vector.load %arg5[%c0_27, %c0_28, %c0_29] : memref<2x1x4xf32, #tpu.memory_space<vmem>>, vector<2x1x4xf32>
      tpu.vector_store %arg5[%c0_27, %c0_28, %c0_29], %34 {strides = array<i32>} : memref<2x1x4xf32, #tpu.memory_space<vmem>>, vector<2x1x4xf32>,
    } else {
    }
    return
  }
  func.func @transform_0(%arg0: i32, %arg1: i32) -> (i32, i32, i32) {
    %c0_i32 = arith.constant 0 : i32
    %c0_i32_0 = arith.constant 0 : i32
    return %arg0, %c0_i32, %arg1 : i32, i32, i32
  }
  func.func @transform_1(%arg0: i32, %arg1: i32) -> (i32, i32) {
    %c0_i32 = arith.constant 0 : i32
    %c0_i32_0 = arith.constant 0 : i32
    %c0_i32_1 = arith.constant 0 : i32
    return %c0_i32, %c0_i32_0 : i32, i32
  }
  func.func @transform_2(%arg0: i32, %arg1: i32) -> (i32, i32) {
    %c0_i32 = arith.constant 0 : i32
    %c0_i32_0 = arith.constant 0 : i32
    %c0_i32_1 = arith.constant 0 : i32
    return %c0_i32, %c0_i32_0 : i32, i32
  }
  func.func @transform_3(%arg0: i32, %arg1: i32) -> (i32, i32, i32) {
    %c0_i32 = arith.constant 0 : i32
    %c0_i32_0 = arith.constant 0 : i32
    %c0_i32_1 = arith.constant 0 : i32
    return %arg0, %c0_i32, %c0_i32_0 : i32, i32, i32
  }
}

</mosaic_0001>

<llo_original>
// kernel: tpu_custom_call.1
$region0: #{tpu_custom_call.1}
  #allocation0 [shape = 'u32[]', space=smem, size = 0x4, offset = 0x4, fixed_abs, tag = 'smem constant byte address 0x4 - core index']
  #allocation1 [shape = 'u32[72,128]{1,0:T(1,128)}', space=vmem, size = 0x9000, scoped, tag = 'internal scratch']
  #allocation2 [shape = 'f32[2,4]{1,0:T(2,128)}', space=vmem, size = 0x400, scoped, tag = 'scratch operand']
  #allocation3 [shape = 'f32[2,4]{1,0:T(2,128)}', space=vmem, size = 0x400, scoped, tag = 'scratch operand']
  %s0 = inlined_call_operand.vmem [shape: f32[2,4,16], index: 0, kind: input, shape index: {}]
  %s1 = inlined_call_operand.vmem [shape: f32[4,32], index: 1, kind: input, shape index: {}]
  %s2 = inlined_call_operand.vmem [shape: f32[32,4], index: 2, kind: input, shape index: {}]
  %s3 = inlined_call_operand.hbm [shape: f32[2,1,4], index: 3, kind: output, shape index: {}]
  %s4 = sld [smem:[#allocation0]]
  $region30: #{tpu_custom_call.1} parent=0
    _
  %s6 = ssub.s32 1, %s4
  %s7 = scalar_select 0, %s6, %s4
  $region1: #{tpu_custom_call.1} parent=0
    #allocation4 [shape = 'u8[1024]{0}', space=vmem, size = 0x400, scoped, tag = 'output window, operand 0, single buffered']
    #allocation5 [shape = 's32[1]{0}', space=sflag, size = 0x4, scoped, tag = 'scoped memory for tpu_custom_call.1']
    %8 = vsyncpa [#allocation5], 0
    // Predicated region
    $region2: #{tpu_custom_call.1} parent=1 // pred_check
      _
    $region3: #{tpu_custom_call.1} parent=1 // pred_check_branch
      %10 = sbr.rel (0) target = $region5
    $region4: #{tpu_custom_call.1} parent=1 // pred_region
      _
    $region5: #{tpu_custom_call.1} parent=1 // pred_fallthru
      _
    // Predicated region
    $region6: #{tpu_custom_call.1} parent=1 // pred_check
      _
    $region7: #{tpu_custom_call.1} parent=1 // pred_check_branch
      %12 = sbr.rel (0) target = $region9
    $region8: #{tpu_custom_call.1} parent=1 // pred_region
      _
    $region9: #{tpu_custom_call.1} parent=1 // pred_fallthru
      _
    // Predicated region
    $region10: #{tpu_custom_call.1} parent=1 // pred_check
      _
    $region11: #{tpu_custom_call.1} parent=1 // pred_check_branch
      %14 = sbr.rel (0) target = $region13
    $region12: #{tpu_custom_call.1} parent=1 // pred_region
      _
    $region13: #{tpu_custom_call.1} parent=1 // pred_fallthru
      _
    %p15 = scmp.eq.s32.totalorder 0, 0
    // Predicated region
    $region14: #{tpu_custom_call.1} parent=1 // pred_check
      %p16 = pneg %p15
    $region15: #{tpu_custom_call.1} parent=1 // pred_check_branch
      %18 = sbr.rel (%p16) target = $region17
    $region16: #{tpu_custom_call.1} parent=1 // pred_region
      %vm19 = vcmask 25600
      %20 = vst.msk [vmem:[#allocation2] sm:$0x3] %vm19, 0.0
      %21 = vst.msk [vmem:[#allocation3] sm:$0x3] %vm19, -inf
    $region17: #{tpu_custom_call.1} parent=1 // pred_fallthru
      _
    %v22 = vld [vmem:[%s0] sm:$0xf]
    %v23 = vld [vmem:[%s0 + $0x4] sm:$0xf]
    %v24 = vld [vmem:[#allocation2] sm:$0x3]
    %vm25 = vcmask 125952
    %v26 = vsel %vm25, %v22, 0.0
    %27 = vadd.xlane.f32.xlu0 %v26
    %v28 = vpop.xlane.xlu0 %27
    %v29 = vsel %vm25, %v23, 0.0
    %30 = vadd.xlane.f32.xlu0 %v29
    %v31 = vpop.xlane.xlu0 %30
    %v34 = vlaneseq
    %v35 = vand.u32 %v34, 127
    %v36 = vperm.slane %v28, %v35
    %v37 = vperm.slane %v31, %v35
    %vm38 = vcmask 1041409
    %v39 = vsel %vm38, %v37, %v36
    %v41 = vadd.f32 %v24, %v39
    %vm42 = vcmask 25600
    %43 = vst.msk [vmem:[#allocation2] sm:$0x3] %vm42, %v41
    %v44 = vld [vmem:[#allocation3] sm:$0x3]
    %v45 = vsel %vm25, %v22, -inf
    %46 = vmax.xlane.f32.xlu0 %v45
    %v47 = vpop.xlane.xlu0 %46
    %v48 = vsel %vm25, %v23, -inf
    %49 = vmax.xlane.f32.xlu0 %v48
    %v50 = vpop.xlane.xlu0 %49
    %v53 = vperm.slane %v47, %v35
    %v54 = vperm.slane %v50, %v35
    %v55 = vsel %vm38, %v54, %v53
    %v57 = vmax.f32 %v44, %v55
    %58 = vst.msk [vmem:[#allocation3] sm:$0x3] %vm42, %v57
    // Predicated region
    $region18: #{tpu_custom_call.1} parent=1 // pred_check
      %p59 = pneg %p15
    $region19: #{tpu_custom_call.1} parent=1 // pred_check_branch
      %61 = sbr.rel (%p59) target = $region21
    $region20: #{tpu_custom_call.1} parent=1 // pred_region
      %v62 = vld [vmem:[#allocation2] sm:$0x3]
      %v63 = vmul.f32 %v62, 0.0625
      %v64 = vld [vmem:[#allocation3] sm:$0x3]
      %v66 = vrot.slane %v64, 6
      %vm68 = vcmask 1041408
      %v69 = vsel %vm68, %v63, %v66
      %v70 = vld [vmem:[%s1] sm:$0xf]
      %vm71 = vcmask 31744
      %v73 = vsel %vm71, %v69, 0
      %vm75 = vcmask 1043456
      %v77 = vsel %vm75, %v70, 0
      %79 = vmatpush.msra.mxu0 0.0
      %80 = vmatpush.msra.mxu0 0.0
      %81 = vmatpush.msra.mxu0 0.0
      %82 = vmatpush.msra.mxu0 0.0
      %83 = vmatpush.msra.mxu0 0.0
      %84 = vmatpush.msra.mxu0 0.0
      %85 = vmatpush.msra.mxu0 0.0
      %86 = vmatpush.msra.mxu0 0.0
      %87 = vmatpush.msra.mxu0 0.0
      %88 = vmatpush.msra.mxu0 0.0
      %89 = vmatpush.msra.mxu0 0.0
      %90 = vmatpush.msra.mxu0 0.0
      %91 = vmatpush.msra.mxu0 0.0
      %92 = vmatpush.msra.mxu0 0.0
      %93 = vmatpush.msra.mxu0 0.0
      %94 = vmatpush.msra.mxu0 %v77
      %95 = vmatmul.f32.gmra.mxu0 %v73
      %v96 = vpop.f32.mrf.mxu0
      %v97 = vadd.f32 0.0, %v96
      %98 = vdwg.mxu0
      %v99 = vmax.f32 %v97, 0.0
      %v100 = vld [vmem:[%s2] sm:$0xff]
      %v101 = vld [vmem:[%s2 + $0x8] sm:$0xff]
      %v102 = vld [vmem:[%s2 + $0x10] sm:$0xff]
      %v103 = vld [vmem:[%s2 + $0x18] sm:$0xff]
      %vm104 = vcmask 261120
      %v106 = vsel %vm104, %v99, 0
      %108 = vmatpush.msra.mxu0 0.0
      %109 = vmatpush.msra.mxu0 0.0
      %110 = vmatpush.msra.mxu0 0.0
      %111 = vmatpush.msra.mxu0 0.0
      %112 = vmatpush.msra.mxu0 0.0
      %113 = vmatpush.msra.mxu0 0.0
      %114 = vmatpush.msra.mxu0 0.0
      %115 = vmatpush.msra.mxu0 0.0
      %116 = vmatpush.msra.mxu0 0.0
      %117 = vmatpush.msra.mxu0 0.0
      %118 = vmatpush.msra.mxu0 0.0
      %119 = vmatpush.msra.mxu0 0.0
      %120 = vmatpush.msra.mxu0 %v103
      %121 = vmatpush.msra.mxu0 %v102
      %122 = vmatpush.msra.mxu0 %v101
      %123 = vmatpush.msra.mxu0 %v100
      %124 = vmatmul.f32.gmra.mxu0 %v106
      %v125 = vpop.f32.mrf.mxu0
      %v126 = vadd.f32 0.0, %v125
      %127 = vdwg.mxu0
      %v129 = vrot.slane %v126, 2
      %v131 = vadd.f32 %v126, %v129
      %v132 = vxor.u32 %v131, 2147483648
      %v133 = vmul.f32 %v132, 1.442695
      %v134 = vpow.pop %v133
      %v135 = vadd.f32 %v134, 1.0
      %v136 = vrcp.pop %v135
      %v137 = vmul.f32 %v135, %v136
      %v138 = vsub.f32 1.0, %v137
      %v139 = vmul.f32 %v136, %v138
      %v140 = vadd.f32 %v136, %v139
      %vm141 = vweird.f32 %v135
      %vm142 = vweird.f32 %v136
      %vm143 = vmor %vm141, %vm142
      %v144 = vsel %vm143, %v136, %v140
      %v145 = vand.u32 2147483647, %v135
      %vm146 = vcmp.eq.f32.partialorder %v145, 8.507059e+37
      %v147 = vand.u32 %v135, 2147483648
      %v148 = vor.u32 1.1754944e-38, %v147
      %v149 = vsel %vm146, %v148, %v144
      %v150 = vmul.f32 1.0, %v149
      %v152 = vrot.slane %v150, 1
      %vm154 = vcmask 24576
      %155 = vst.msk [vmem:[#allocation4] sm:$0x1] %vm154, %v150
      %156 = vst.msk [vmem:[#allocation4 + $0x1] sm:$0x1] %vm154, %v152
    $region21: #{tpu_custom_call.1} parent=1 // pred_fallthru
      _
    // Predicated region
    $region22: #{tpu_custom_call.1} parent=1 // pred_check
      _
    $region23: #{tpu_custom_call.1} parent=1 // pred_check_branch
      %158 = sbr.rel (0) target = $region25
    $region24: #{tpu_custom_call.1} parent=1 // pred_region
      %160 = vsyncadd [#allocation5], 0
      %s161 = sshll.u32 [#allocation4], 4
      %s162 = int_to_ptr.vmem [resolvable:$true] %s161
      %s163 = sshll.u32 %s3, 4
      %s164 = int_to_ptr.hbm [resolvable:$true] %s163
      %169 = dma.vmem_to_hbm [thread:$0]  %s162, 32, %s164, [#allocation5], 16, 16, 1
    $region25: #{tpu_custom_call.1} parent=1 // pred_fallthru
      _
    // Predicated region
    $region26: #{tpu_custom_call.1} parent=1 // pred_check
      _
    $region27: #{tpu_custom_call.1} parent=1 // pred_check_branch
      %171 = sbr.rel (0) target = $region29
    $region28: #{tpu_custom_call.1} parent=1 // pred_region
      %173 = dma.done [#allocation5], 32
    $region29: #{tpu_custom_call.1} parent=1 // pred_fallthru
      _
    %174 = vsyncpa [#allocation5], 1

</llo_original>
